<compile_context>
chip_gen: v7x
topology: tpu7x:2x2x1
jax: 0.10.0
libtpu: 0.0.40
codegen_flags: <defaults>
</compile_context>

<pallas_src>
import functools
import math

import jax
import jax.numpy as jnp
from jax.experimental import pallas as pl
from jax.experimental.pallas import tpu as pltpu

# ---- Tokenizer hyper-parameters (the module's ctor args, fixed here) --------
KH = KW = 3                         # conv kernel_size
CONV_STRIDE = 1                     # conv stride (im2col assumes stride == 1)
CONV_PAD = 1                        # conv padding
POOL_K, POOL_S, POOL_P = 3, 2, 1    # MaxPool2d(kernel=3, stride=2, padding=1)
NEG_INF = float("-inf")


def _tokenizer_kernel(p_ref, w_ref, o_ref, *, ow):
    """One grid step = `bblk` batch elements.

    p_ref : (bblk, 4*OH*OW, Kdim) bf16 im2col patches, rows ordered by
            (row parity, col parity, i, j) of the conv output pixel.
    w_ref : (Kdim, Cout)          bf16 conv weight (no padding).
    o_ref : (bblk, OH*OW, Cout)   f32 pooled output (row-major (i, j)).
    """
    bblk, rows, kdim = p_ref.shape          # rows = 4 * OH * OW
    cout = w_ref.shape[-1]
    n = rows // 4                           # pooled pixels per batch element

    # ---- Conv2d (bias=False, Identity activation): one im2col MXU matmul ----
    acc = jnp.dot(p_ref[...].reshape(bblk * rows, kdim), w_ref[...],
                  preferred_element_type=jnp.float32)       # (bblk*rows, cout)

    # Slab s = 2*eh + ew holds conv outputs at (2i + eh, 2j + ew), flattened
    # row-major over pooled (i, j).  Leading-dim reshape/slices are free.
    a = acc.reshape(bblk, 4, n, cout)
    hee, heo, hoe, hoo = a[:, 0], a[:, 1], a[:, 2], a[:, 3]

    neg_inf = jnp.float32(NEG_INF)

    def shift_rows(x, k):
        # y[:, f] = x[:, f - k]; the first k flattened rows are -inf.
        pad = jnp.full((bblk, k, cout), neg_inf, jnp.float32)
        return jnp.concatenate([pad, x[:, :-k, :]], axis=1)

    # MaxPool2d(3, 2, 1) with Hc == 2*OH, Wc == 2*OW:
    #   out[i, j] = max over conv rows {2i-1, 2i, 2i+1} x cols {2j-1, 2j, 2j+1}
    # H direction within each column parity (row 2i-1 = odd row i-1):
    ve = jnp.maximum(jnp.maximum(hee, hoe), shift_rows(hoe, ow))   # cols 2j
    vo = jnp.maximum(jnp.maximum(heo, hoo), shift_rows(hoo, ow))   # cols 2j+1
    # W direction: col 2j-1 = vo at pooled col j-1 -> flattened shift by one,
    # with the wrap-around at j == 0 masked to -inf (pool left border).
    j0 = (jax.lax.broadcasted_iota(jnp.int32, (1, n, cout), 1) % ow) == 0
    vom1 = jnp.where(j0, neg_inf, shift_rows(vo, 1))
    out = jnp.maximum(jnp.maximum(ve, vo), vom1)                   # (bblk,n,c)

    o_ref[...] = out.astype(o_ref.dtype)


def _tensorcores_per_chip():
    """Best-effort TC-per-chip count (only v7x-class chips have 2)."""
    try:
        kind = jax.devices()[0].device_kind.lower()
    except Exception:
        return 1
    return 2 if ("v7" in kind or "tpu7" in kind) else 1


def _pick_bblk(batch, per_elem_bytes, num_tc, budget_bytes):
    """Largest divisor of `batch` that fits the VMEM budget; on multi-TC chips
    keep at least `num_tc` grid steps so every core gets work."""
    for cand in range(batch, 0, -1):
        if batch % cand:
            continue
        if cand > 1 and cand * per_elem_bytes > budget_bytes:
            continue
        if num_tc > 1 and batch >= num_tc and (batch // cand) < num_tc:
            continue
        return cand
    return 1


def tokenizer_forward(x_nchw, weight_khwc, *, bblk=None):
    """x_nchw: (B, Cin, H, W);  weight_khwc: (KH, KW, Cin, Cout).

    Returns (B, OH*OW, Cout) -- same semantics as Tokenizer.forward.
    """
    B, Cin, H, W = x_nchw.shape
    kh, kw_, cin_w, Cout = weight_khwc.shape
    assert (kh, kw_, cin_w) == (KH, KW, Cin)
    assert CONV_STRIDE == 1  # im2col slicing below assumes unit conv stride

    Hc = (H + 2 * CONV_PAD - KH) // CONV_STRIDE + 1
    Wc = (W + 2 * CONV_PAD - KW) // CONV_STRIDE + 1
    OH = (Hc + 2 * POOL_P - POOL_K) // POOL_S + 1
    OW = (Wc + 2 * POOL_P - POOL_K) // POOL_S + 1
    # TODO(synk): odd conv-output sizes would need an extra -inf pooling border.
    assert Hc == 2 * OH and Wc == 2 * OW, "kernel assumes even conv output dims"

    Kdim = KH * KW * Cin
    n = OH * OW

    # -- im2col (absorbs NCHW->NHWC transpose + conv zero padding), bf16.
    #    K is left at its real size (36) -- no HBM zero padding.
    x = jnp.transpose(x_nchw.astype(jnp.bfloat16), (0, 2, 3, 1))        # NHWC
    xp = jnp.pad(x, ((0, 0), (CONV_PAD,) * 2, (CONV_PAD,) * 2, (0, 0)))
    cols = [xp[:, dy:dy + Hc, dx:dx + Wc, :]
            for dy in range(KH) for dx in range(KW)]
    patches = jnp.concatenate(cols, axis=-1)                # (B, Hc, Wc, Kdim)
    # Reorder conv pixels by (row parity, col parity, i, j): pooling in the
    # kernel then needs only contiguous-slice maxima (no scratch / strides).
    patches = patches.reshape(B, OH, 2, OW, 2, Kdim)
    patches = jnp.transpose(patches, (0, 2, 4, 1, 3, 5)).reshape(B, 4 * n, Kdim)
    # TODO(synk): for large images, build the im2col inside the kernel from the
    # raw padded NHWC block instead of reading the 9x-replicated patch tensor.

    w2 = weight_khwc.reshape(Kdim, Cout).astype(jnp.bfloat16)

    # -- batch blocking: amortize per-step overhead under a VMEM budget; only
    #    multi-TC chips (v7x) benefit from keeping >= 2 grid steps.
    num_tc = _tensorcores_per_chip()
    per_elem = 2 * (4 * n * Kdim * 2) + 14 * (n * Cout * 4)   # bytes, rough
    if bblk is None:
        bblk = _pick_bblk(B, per_elem, num_tc, budget_bytes=10 << 20)
    assert B % bblk == 0
    grid = (B // bblk,)

    vmem_est = bblk * per_elem + 2 * Kdim * Cout * 2
    cp_kwargs = dict(dimension_semantics=("parallel",))
    if vmem_est > (12 << 20):          # raise scoped VMEM only when needed
        cp_kwargs["vmem_limit_bytes"] = int(min(vmem_est * 5 // 4, 48 << 20))

    out = pl.pallas_call(
        functools.partial(_tokenizer_kernel, ow=OW),
        out_shape=jax.ShapeDtypeStruct((B, n, Cout), jnp.float32),
        grid_spec=pltpu.PrefetchScalarGridSpec(
            num_scalar_prefetch=0,
            grid=grid,
            in_specs=[
                pl.BlockSpec((bblk, 4 * n, Kdim), lambda b: (b, 0, 0)),
                pl.BlockSpec((Kdim, Cout), lambda b: (0, 0)),
            ],
            out_specs=pl.BlockSpec((bblk, n, Cout), lambda b: (b, 0, 0)),
        ),
        compiler_params=pltpu.CompilerParams(**cp_kwargs),
    )(patches, w2)

    # (OH, OW) is flattened row-major == flatten(2,3).transpose(-2,-1) of the
    # NCHW PyTorch result; no channel padding to strip.
    return out


def _reference(x_nchw, weight_khwc):
    """Pure-JAX reference mirroring the PyTorch module (for a sanity check)."""
    w_oihw = jnp.transpose(weight_khwc, (3, 2, 0, 1))
    conv = jax.lax.conv_general_dilated(
        x_nchw.astype(jnp.float32), w_oihw.astype(jnp.float32),
        window_strides=(CONV_STRIDE, CONV_STRIDE),
        padding=((CONV_PAD, CONV_PAD), (CONV_PAD, CONV_PAD)),
        dimension_numbers=("NCHW", "OIHW", "NCHW"),
        precision=jax.lax.Precision.HIGHEST)
    pooled = jax.lax.reduce_window(
        conv, -jnp.inf, jax.lax.max,
        window_dimensions=(1, 1, POOL_K, POOL_K),
        window_strides=(1, 1, POOL_S, POOL_S),
        padding=((0, 0), (0, 0), (POOL_P, POOL_P), (POOL_P, POOL_P)))
    B, C, Ho, Wo = pooled.shape
    return jnp.transpose(pooled.reshape(B, C, Ho * Wo), (0, 2, 1))


if __name__ == "__main__":
    B, Cin, H, W = 2, 4, 16, 16
    Cout = 64

    key = jax.random.PRNGKey(0)
    kx, kw = jax.random.split(key)
    x = jax.random.normal(kx, (B, Cin, H, W), jnp.float32)

    # kaiming_normal_ (fan_in, gain=sqrt(2)): std = sqrt(2 / (Cin*KH*KW))
    fan_in = Cin * KH * KW
    weight = jax.random.normal(kw, (KH, KW, Cin, Cout), jnp.float32) \
        * math.sqrt(2.0 / fan_in)

    # Round inputs to bf16 once so the bf16-MXU kernel and the f32 reference
    # see identical operands (only accumulation order differs).
    x = x.astype(jnp.bfloat16).astype(jnp.float32)
    weight = weight.astype(jnp.bfloat16).astype(jnp.float32)

    out = tokenizer_forward(x, weight)
    out = jax.block_until_ready(out)

    ref = _reference(x, weight)
    assert out.shape == ref.shape == (B, (H // 2) * (W // 2), Cout), \
        (out.shape, ref.shape)
    assert jnp.allclose(out, ref, atol=1e-3, rtol=1e-3), \
        float(jnp.max(jnp.abs(out - ref)))

    print("KERNEL_OK")
</pallas_src>

<mosaic_0001>
module attributes {stable_mosaic.version = 11 : i64} {
  func.func @_tokenizer_kernel(%arg0: i32, %arg1: memref<2x256x36xbf16, #tpu.memory_space<vmem>>, %arg2: memref<36x64xbf16, #tpu.memory_space<vmem>>, %arg3: memref<2x64x64xf32, #tpu.memory_space<vmem>>) attributes {dimension_semantics = [#tpu.dimension_semantics<parallel>], iteration_bounds = array<i64: 1>, scalar_prefetch = 0 : i64, scratch_operands = 0 : i64, tpu.core_type = #tpu.core_type<tc>, window_params = [{transform_indices = @transform_0, window_bounds = array<i64: 2, 256, 36>}, {pipeline_mode = #tpu.pipeline_mode<synchronous>, transform_indices = @transform_1, window_bounds = array<i64: 36, 64>}, {transform_indices = @transform_2, window_bounds = array<i64: 2, 64, 64>}]} {
    %c0 = arith.constant 0 : index
    %c0_0 = arith.constant 0 : index
    %c0_1 = arith.constant 0 : index
    %0 = vector.load %arg1[%c0, %c0_0, %c0_1] : memref<2x256x36xbf16, #tpu.memory_space<vmem>>, vector<2x256x36xbf16>
    %1 = vector.shape_cast %0 : vector<2x256x36xbf16> to vector<512x36xbf16>
    %c0_2 = arith.constant 0 : index
    %c0_3 = arith.constant 0 : index
    %2 = vector.load %arg2[%c0_2, %c0_3] : memref<36x64xbf16, #tpu.memory_space<vmem>>, vector<36x64xbf16>
    %cst = arith.constant dense<0.000000e+00> : vector<512x64xf32>
    %3 = tpu.matmul %1, %2, %cst {dimension_numbers = #tpu.dot_dimension_numbers<[1], [0], [0], [1], [0, 0, 1, 1], [], []>} : vector<512x36xbf16>, vector<36x64xbf16>, vector<512x64xf32> -> vector<512x64xf32>
    %4 = vector.shape_cast %3 : vector<512x64xf32> to vector<2x4x64x64xf32>
    %5 = vector.extract_strided_slice %4 {offsets = [0, 0, 0, 0], sizes = [2, 1, 64, 64], strides = [1, 1, 1, 1]} : vector<2x4x64x64xf32> to vector<2x1x64x64xf32>
    %6 = vector.shape_cast %5 : vector<2x1x64x64xf32> to vector<2x64x64xf32>
    %7 = vector.extract_strided_slice %4 {offsets = [0, 1, 0, 0], sizes = [2, 1, 64, 64], strides = [1, 1, 1, 1]} : vector<2x4x64x64xf32> to vector<2x1x64x64xf32>
    %8 = vector.shape_cast %7 : vector<2x1x64x64xf32> to vector<2x64x64xf32>
    %9 = vector.extract_strided_slice %4 {offsets = [0, 2, 0, 0], sizes = [2, 1, 64, 64], strides = [1, 1, 1, 1]} : vector<2x4x64x64xf32> to vector<2x1x64x64xf32>
    %10 = vector.shape_cast %9 : vector<2x1x64x64xf32> to vector<2x64x64xf32>
    %11 = vector.extract_strided_slice %4 {offsets = [0, 3, 0, 0], sizes = [2, 1, 64, 64], strides = [1, 1, 1, 1]} : vector<2x4x64x64xf32> to vector<2x1x64x64xf32>
    %12 = vector.shape_cast %11 : vector<2x1x64x64xf32> to vector<2x64x64xf32>
    %13 = arith.maximumf %6, %10 : vector<2x64x64xf32>
    %cst_4 = arith.constant 0xFF800000 : f32
    %14 = vector.broadcast %cst_4 : f32 to vector<2x8x64xf32>
    %15 = vector.extract_strided_slice %10 {offsets = [0, 0, 0], sizes = [2, 56, 64], strides = [1, 1, 1]} : vector<2x64x64xf32> to vector<2x56x64xf32>
    %16 = tpu.concatenate %14, %15 in 1 : vector<2x8x64xf32>, vector<2x56x64xf32> -> vector<2x64x64xf32>
    %17 = arith.maximumf %13, %16 : vector<2x64x64xf32>
    %18 = arith.maximumf %8, %12 : vector<2x64x64xf32>
    %cst_5 = arith.constant 0xFF800000 : f32
    %19 = vector.broadcast %cst_5 : f32 to vector<2x8x64xf32>
    %20 = vector.extract_strided_slice %12 {offsets = [0, 0, 0], sizes = [2, 56, 64], strides = [1, 1, 1]} : vector<2x64x64xf32> to vector<2x56x64xf32>
    %21 = tpu.concatenate %19, %20 in 1 : vector<2x8x64xf32>, vector<2x56x64xf32> -> vector<2x64x64xf32>
    %22 = arith.maximumf %18, %21 : vector<2x64x64xf32>
    %23 = tpu.iota {dimensions = array<i32: 1>} : vector<1x64x64xi32>
    %c8_i32 = arith.constant 8 : i32
    %c0_i32 = arith.constant 0 : i32
    %24 = arith.cmpi eq, %c8_i32, %c0_i32 : i32
    %c1_i32 = arith.constant 1 : i32
    %25 = arith.select %24, %c1_i32, %c8_i32 : i32
    %26 = vector.broadcast %25 : i32 to vector<1x64x64xi32>
    %27 = arith.remsi %23, %26 : vector<1x64x64xi32>
    %c0_i32_6 = arith.constant 0 : i32
    %28 = vector.broadcast %c0_i32_6 : i32 to vector<1x64x64xi32>
    %29 = arith.cmpi ne, %27, %28 : vector<1x64x64xi32>
    %c0_i32_7 = arith.constant 0 : i32
    %30 = vector.broadcast %c0_i32_7 : i32 to vector<1x64x64xi32>
    %31 = arith.cmpi slt, %27, %30 : vector<1x64x64xi32>
    %c0_i32_8 = arith.constant 0 : i32
    %32 = arith.cmpi slt, %25, %c0_i32_8 : i32
    %33 = vector.broadcast %32 : i1 to vector<1x64x64xi1>
    %34 = vector.broadcast %33 : vector<1x64x64xi1> to vector<1x64x64xi1>
    %35 = arith.xori %31, %34 : vector<1x64x64xi1>
    %36 = arith.andi %35, %29 : vector<1x64x64xi1>
    %37 = vector.broadcast %25 : i32 to vector<1x64x64xi32>
    %38 = arith.addi %27, %37 : vector<1x64x64xi32>
    %39 = arith.select %36, %38, %27 : vector<1x64x64xi1>, vector<1x64x64xi32>
    %c0_i32_9 = arith.constant 0 : i32
    %40 = vector.broadcast %c0_i32_9 : i32 to vector<1x64x64xi32>
    %41 = arith.cmpi eq, %39, %40 : vector<1x64x64xi32>
    %cst_10 = arith.constant 0xFF800000 : f32
    %42 = vector.broadcast %cst_10 : f32 to vector<2x1x64xf32>
    %43 = vector.extract_strided_slice %22 {offsets = [0, 0, 0], sizes = [2, 63, 64], strides = [1, 1, 1]} : vector<2x64x64xf32> to vector<2x63x64xf32>
    %44 = tpu.concatenate %42, %43 in 1 : vector<2x1x64xf32>, vector<2x63x64xf32> -> vector<2x64x64xf32>
    %cst_11 = arith.constant 0xFF800000 : f32
    %45 = vector.shape_cast %41 : vector<1x64x64xi1> to vector<1x64x64xi1>
    %46 = vector.broadcast %45 : vector<1x64x64xi1> to vector<2x64x64xi1>
    %47 = vector.broadcast %cst_11 : f32 to vector<2x64x64xf32>
    %48 = arith.select %46, %47, %44 : vector<2x64x64xi1>, vector<2x64x64xf32>
    %49 = arith.maximumf %17, %22 : vector<2x64x64xf32>
    %50 = arith.maximumf %49, %48 : vector<2x64x64xf32>
    %c0_12 = arith.constant 0 : index
    %c0_13 = arith.constant 0 : index
    %c0_14 = arith.constant 0 : index
    %51 = vector.load %arg3[%c0_12, %c0_13, %c0_14] : memref<2x64x64xf32, #tpu.memory_space<vmem>>, vector<2x64x64xf32>
    tpu.vector_store %arg3[%c0_12, %c0_13, %c0_14], %50 {strides = array<i32>} : memref<2x64x64xf32, #tpu.memory_space<vmem>>, vector<2x64x64xf32>,
    return
  }
  func.func @transform_0(%arg0: i32) -> (i32, i32, i32) {
    %c0_i32 = arith.constant 0 : i32
    %c0_i32_0 = arith.constant 0 : i32
    %c0_i32_1 = arith.constant 0 : i32
    return %arg0, %c0_i32, %c0_i32_0 : i32, i32, i32
  }
  func.func @transform_1(%arg0: i32) -> (i32, i32) {
    %c0_i32 = arith.constant 0 : i32
    %c0_i32_0 = arith.constant 0 : i32
    %c0_i32_1 = arith.constant 0 : i32
    return %c0_i32, %c0_i32_0 : i32, i32
  }
  func.func @transform_2(%arg0: i32) -> (i32, i32, i32) {
    %c0_i32 = arith.constant 0 : i32
    %c0_i32_0 = arith.constant 0 : i32
    %c0_i32_1 = arith.constant 0 : i32
    return %arg0, %c0_i32, %c0_i32_0 : i32, i32, i32
  }
}

</mosaic_0001>

<llo_original>
// kernel: tpu_custom_call.1
$region0: #{tpu_custom_call.1}
  #allocation0 [shape = 'u32[]', space=smem, size = 0x4, offset = 0x4, fixed_abs, tag = 'smem constant byte address 0x4 - core index']
  #allocation1 [shape = 'u32[144,128]{1,0:T(1,128)}', space=vmem, size = 0x12000, scoped, tag = 'internal scratch']
  %s0 = inlined_call_operand.vmem [shape: bf16[2,256,36], index: 0, kind: input, shape index: {}]
  %s1 = inlined_call_operand.vmem [shape: bf16[36,64], index: 1, kind: input, shape index: {}]
  %s2 = inlined_call_operand.hbm [shape: f32[2,64,64], index: 2, kind: output, shape index: {}]
  %s3 = sld [smem:[#allocation0]]
  $region18: #{tpu_custom_call.1} parent=0
    _
  %s5 = ssub.s32 1, %s3
  %s6 = scalar_select 0, %s5, %s3
  $region1: #{tpu_custom_call.1} parent=0
    #allocation2 [shape = 'u8[65536]{0}', space=vmem, size = 0x10000, scoped, tag = 'output window, operand 0, single buffered']
    #allocation3 [shape = 's32[1]{0}', space=sflag, size = 0x4, scoped, tag = 'scoped memory for tpu_custom_call.1']
    %7 = vsyncpa [#allocation3], 0
    // Predicated region
    $region2: #{tpu_custom_call.1} parent=1 // pred_check
      _
    $region3: #{tpu_custom_call.1} parent=1 // pred_check_branch
      %9 = sbr.rel (0) target = $region5
    $region4: #{tpu_custom_call.1} parent=1 // pred_region
      _
    $region5: #{tpu_custom_call.1} parent=1 // pred_fallthru
      _
    // Predicated region
    $region6: #{tpu_custom_call.1} parent=1 // pred_check
      _
    $region7: #{tpu_custom_call.1} parent=1 // pred_check_branch
      %11 = sbr.rel (0) target = $region9
    $region8: #{tpu_custom_call.1} parent=1 // pred_region
      _
    $region9: #{tpu_custom_call.1} parent=1 // pred_fallthru
      _
    %v13 = vld [vmem:[%s0] sm:$0xf]
    %v14 = vld [vmem:[%s0 + $0x4] sm:$0xf]
    %v15 = vld [vmem:[%s0 + $0x8] sm:$0xf]
    %v16 = vld [vmem:[%s0 + $0xc] sm:$0xf]
    %v17 = vld [vmem:[%s0 + $0x10] sm:$0xf]
    %v18 = vld [vmem:[%s0 + $0x14] sm:$0xf]
    %v19 = vld [vmem:[%s0 + $0x18] sm:$0xf]
    %v20 = vld [vmem:[%s0 + $0x1c] sm:$0xf]
    %v21 = vld [vmem:[%s0 + $0x20] sm:$0xf]
    %v22 = vld [vmem:[%s0 + $0x24] sm:$0xf]
    %v23 = vld [vmem:[%s0 + $0x28] sm:$0xf]
    %v24 = vld [vmem:[%s0 + $0x2c] sm:$0xf]
    %v25 = vld [vmem:[%s0 + $0x30] sm:$0xf]
    %v26 = vld [vmem:[%s0 + $0x34] sm:$0xf]
    %v27 = vld [vmem:[%s0 + $0x38] sm:$0xf]
    %v28 = vld [vmem:[%s0 + $0x3c] sm:$0xf]
    %v29 = vld [vmem:[%s0 + $0x40] sm:$0xf]
    %v30 = vld [vmem:[%s0 + $0x44] sm:$0xf]
    %v31 = vld [vmem:[%s0 + $0x48] sm:$0xf]
    %v32 = vld [vmem:[%s0 + $0x4c] sm:$0xf]
    %v33 = vld [vmem:[%s0 + $0x50] sm:$0xf]
    %v34 = vld [vmem:[%s0 + $0x54] sm:$0xf]
    %v35 = vld [vmem:[%s0 + $0x58] sm:$0xf]
    %v36 = vld [vmem:[%s0 + $0x5c] sm:$0xf]
    %v37 = vld [vmem:[%s0 + $0x60] sm:$0xf]
    %v38 = vld [vmem:[%s0 + $0x64] sm:$0xf]
    %v39 = vld [vmem:[%s0 + $0x68] sm:$0xf]
    %v40 = vld [vmem:[%s0 + $0x6c] sm:$0xf]
    %v41 = vld [vmem:[%s0 + $0x70] sm:$0xf]
    %v42 = vld [vmem:[%s0 + $0x74] sm:$0xf]
    %v43 = vld [vmem:[%s0 + $0x78] sm:$0xf]
    %v44 = vld [vmem:[%s0 + $0x7c] sm:$0xf]
    %v45 = vld [vmem:[%s0 + $0x80] sm:$0xf]
    %v46 = vld [vmem:[%s0 + $0x84] sm:$0xf]
    %v47 = vld [vmem:[%s0 + $0x88] sm:$0xf]
    %v48 = vld [vmem:[%s0 + $0x8c] sm:$0xf]
    %v49 = vld [vmem:[%s0 + $0x90] sm:$0xf]
    %v50 = vld [vmem:[%s0 + $0x94] sm:$0xf]
    %v51 = vld [vmem:[%s0 + $0x98] sm:$0xf]
    %v52 = vld [vmem:[%s0 + $0x9c] sm:$0xf]
    %v53 = vld [vmem:[%s0 + $0xa0] sm:$0xf]
    %v54 = vld [vmem:[%s0 + $0xa4] sm:$0xf]
    %v55 = vld [vmem:[%s0 + $0xa8] sm:$0xf]
    %v56 = vld [vmem:[%s0 + $0xac] sm:$0xf]
    %v57 = vld [vmem:[%s0 + $0xb0] sm:$0xf]
    %v58 = vld [vmem:[%s0 + $0xb4] sm:$0xf]
    %v59 = vld [vmem:[%s0 + $0xb8] sm:$0xf]
    %v60 = vld [vmem:[%s0 + $0xbc] sm:$0xf]
    %v61 = vld [vmem:[%s0 + $0xc0] sm:$0xf]
    %v62 = vld [vmem:[%s0 + $0xc4] sm:$0xf]
    %v63 = vld [vmem:[%s0 + $0xc8] sm:$0xf]
    %v64 = vld [vmem:[%s0 + $0xcc] sm:$0xf]
    %v65 = vld [vmem:[%s0 + $0xd0] sm:$0xf]
    %v66 = vld [vmem:[%s0 + $0xd4] sm:$0xf]
    %v67 = vld [vmem:[%s0 + $0xd8] sm:$0xf]
    %v68 = vld [vmem:[%s0 + $0xdc] sm:$0xf]
    %v69 = vld [vmem:[%s0 + $0xe0] sm:$0xf]
    %v70 = vld [vmem:[%s0 + $0xe4] sm:$0xf]
    %v71 = vld [vmem:[%s0 + $0xe8] sm:$0xf]
    %v72 = vld [vmem:[%s0 + $0xec] sm:$0xf]
    %v73 = vld [vmem:[%s0 + $0xf0] sm:$0xf]
    %v74 = vld [vmem:[%s0 + $0xf4] sm:$0xf]
    %v75 = vld [vmem:[%s0 + $0xf8] sm:$0xf]
    %v76 = vld [vmem:[%s0 + $0xfc] sm:$0xf]
    %v77 = vld [vmem:[%s1] sm:$0xf]
    %v78 = vld [vmem:[%s1 + $0x4] sm:$0xf]
    %v79 = vld [vmem:[%s1 + $0x8] sm:$0xf]
    %v80 = vld [vmem:[%s1 + $0xc] sm:$0xf]
    %v81 = vld [vmem:[%s1 + $0x10] sm:$0x3]
    %v146 = vunpack.c.l.b16 %v13
    %v147 = vunpack.c.l.b16 %v14
    %v148 = vunpack.c.l.b16 %v15
    %v149 = vunpack.c.l.b16 %v16
    %v150 = vunpack.c.l.b16 %v17
    %v151 = vunpack.c.l.b16 %v18
    %v152 = vunpack.c.l.b16 %v19
    %v153 = vunpack.c.l.b16 %v20
    %v154 = vunpack.c.l.b16 %v21
    %v155 = vunpack.c.l.b16 %v22
    %v156 = vunpack.c.l.b16 %v23
    %v157 = vunpack.c.l.b16 %v24
    %v158 = vunpack.c.l.b16 %v25
    %v159 = vunpack.c.l.b16 %v26
    %v160 = vunpack.c.l.b16 %v27
    %v161 = vunpack.c.l.b16 %v28
    %v162 = vunpack.c.l.b16 %v29
    %v163 = vunpack.c.l.b16 %v30
    %v164 = vunpack.c.l.b16 %v31
    %v165 = vunpack.c.l.b16 %v32
    %v166 = vunpack.c.l.b16 %v33
    %v167 = vunpack.c.l.b16 %v34
    %v168 = vunpack.c.l.b16 %v35
    %v169 = vunpack.c.l.b16 %v36
    %v170 = vunpack.c.l.b16 %v37
    %v171 = vunpack.c.l.b16 %v38
    %v172 = vunpack.c.l.b16 %v39
    %v173 = vunpack.c.l.b16 %v40
    %v174 = vunpack.c.l.b16 %v41
    %v175 = vunpack.c.l.b16 %v42
    %v176 = vunpack.c.l.b16 %v43
    %v177 = vunpack.c.l.b16 %v44
    %v178 = vunpack.c.l.b16 %v45
    %v179 = vunpack.c.l.b16 %v46
    %v180 = vunpack.c.l.b16 %v47
    %v181 = vunpack.c.l.b16 %v48
    %v182 = vunpack.c.l.b16 %v49
    %v183 = vunpack.c.l.b16 %v50
    %v184 = vunpack.c.l.b16 %v51
    %v185 = vunpack.c.l.b16 %v52
    %v186 = vunpack.c.l.b16 %v53
    %v187 = vunpack.c.l.b16 %v54
    %v188 = vunpack.c.l.b16 %v55
    %v189 = vunpack.c.l.b16 %v56
    %v190 = vunpack.c.l.b16 %v57
    %v191 = vunpack.c.l.b16 %v58
    %v192 = vunpack.c.l.b16 %v59
    %v193 = vunpack.c.l.b16 %v60
    %v194 = vunpack.c.l.b16 %v61
    %v195 = vunpack.c.l.b16 %v62
    %v196 = vunpack.c.l.b16 %v63
    %v197 = vunpack.c.l.b16 %v64
    %v198 = vunpack.c.l.b16 %v65
    %v199 = vunpack.c.l.b16 %v66
    %v200 = vunpack.c.l.b16 %v67
    %v201 = vunpack.c.l.b16 %v68
    %v202 = vunpack.c.l.b16 %v69
    %v203 = vunpack.c.l.b16 %v70
    %v204 = vunpack.c.l.b16 %v71
    %v205 = vunpack.c.l.b16 %v72
    %v206 = vunpack.c.l.b16 %v73
    %v207 = vunpack.c.l.b16 %v74
    %v208 = vunpack.c.l.b16 %v75
    %v209 = vunpack.c.l.b16 %v76
    %v210 = vpack.c.b16 %v147, %v146
    %v211 = vpack.c.b16 %v149, %v148
    %v212 = vpack.c.b16 %v151, %v150
    %v213 = vpack.c.b16 %v153, %v152
    %v214 = vpack.c.b16 %v155, %v154
    %v215 = vpack.c.b16 %v157, %v156
    %v216 = vpack.c.b16 %v159, %v158
    %v217 = vpack.c.b16 %v161, %v160
    %v218 = vpack.c.b16 %v163, %v162
    %v219 = vpack.c.b16 %v165, %v164
    %v220 = vpack.c.b16 %v167, %v166
    %v221 = vpack.c.b16 %v169, %v168
    %v222 = vpack.c.b16 %v171, %v170
    %v223 = vpack.c.b16 %v173, %v172
    %v224 = vpack.c.b16 %v175, %v174
    %v225 = vpack.c.b16 %v177, %v176
    %v226 = vpack.c.b16 %v179, %v178
    %v227 = vpack.c.b16 %v181, %v180
    %v228 = vpack.c.b16 %v183, %v182
    %v229 = vpack.c.b16 %v185, %v184
    %v230 = vpack.c.b16 %v187, %v186
    %v231 = vpack.c.b16 %v189, %v188
    %v232 = vpack.c.b16 %v191, %v190
    %v233 = vpack.c.b16 %v193, %v192
    %v234 = vpack.c.b16 %v195, %v194
    %v235 = vpack.c.b16 %v197, %v196
    %v236 = vpack.c.b16 %v199, %v198
    %v237 = vpack.c.b16 %v201, %v200
    %v238 = vpack.c.b16 %v203, %v202
    %v239 = vpack.c.b16 %v205, %v204
    %v240 = vpack.c.b16 %v207, %v206
    %v241 = vpack.c.b16 %v209, %v208
    %v247 = vunpack.c.l.b16 %v77
    %v248 = vunpack.c.l.b16 %v78
    %v249 = vunpack.c.l.b16 %v79
    %v250 = vunpack.c.l.b16 %v80
    %v251 = vunpack.c.l.b16 %v81
    %v252 = vpack.c.b16 %v248, %v247
    %v253 = vpack.c.b16 %v250, %v249
    %v254 = vpack.c.b16 %v251, %v251
    %vm257 = vcmask 293888
    %v259 = vsel %vm257, %v210, 0
    %v262 = vsel %vm257, %v211, 0
    %v265 = vsel %vm257, %v212, 0
    %v268 = vsel %vm257, %v213, 0
    %v271 = vsel %vm257, %v214, 0
    %v274 = vsel %vm257, %v215, 0
    %v277 = vsel %vm257, %v216, 0
    %v280 = vsel %vm257, %v217, 0
    %v283 = vsel %vm257, %v218, 0
    %v286 = vsel %vm257, %v219, 0
    %v289 = vsel %vm257, %v220, 0
    %v292 = vsel %vm257, %v221, 0
    %v295 = vsel %vm257, %v222, 0
    %v298 = vsel %vm257, %v223, 0
    %v301 = vsel %vm257, %v224, 0
    %v304 = vsel %vm257, %v225, 0
    %v307 = vsel %vm257, %v226, 0
    %v310 = vsel %vm257, %v227, 0
    %v313 = vsel %vm257, %v228, 0
    %v316 = vsel %vm257, %v229, 0
    %v319 = vsel %vm257, %v230, 0
    %v322 = vsel %vm257, %v231, 0
    %v325 = vsel %vm257, %v232, 0
    %v328 = vsel %vm257, %v233, 0
    %v331 = vsel %vm257, %v234, 0
    %v334 = vsel %vm257, %v235, 0
    %v337 = vsel %vm257, %v236, 0
    %v340 = vsel %vm257, %v237, 0
    %v343 = vsel %vm257, %v238, 0
    %v346 = vsel %vm257, %v239, 0
    %v349 = vsel %vm257, %v240, 0
    %v352 = vsel %vm257, %v241, 0
    %vm354 = vcmask 1041408
    %v356 = vsel %vm354, %v254, 0
    %358 = vmatprep.subr.bf16.mxu0 0
    %359 = vmatpush1.bf16.msra.mxu0 %v252
    %360 = vmatprep.subr.bf16.mxu0 0
    %361 = vmatpush1.bf16.msra.mxu0 %v253
    %362 = vmatprep.subr.bf16.mxu0 0
    %363 = vmatpush1.bf16.msra.mxu0 %v356
    %364 = vmatprep.subr.bf16.mxu0 0
    %365 = vmatpush1.bf16.msra.mxu0 0
    %366 = vmatprep.subr.bf16.mxu0 0
    %367 = vmatpush1.bf16.msra.mxu0 0
    %368 = vmatprep.subr.bf16.mxu0 0
    %369 = vmatpush1.bf16.msra.mxu0 0
    %370 = vmatprep.subr.bf16.mxu0 0
    %371 = vmatpush1.bf16.msra.mxu0 0
    %372 = vmatprep.subr.bf16.mxu0 0
    %373 = vmatpush1.bf16.msra.mxu0 0
    %374 = vmatprep.subr.bf16.mxu0 0
    %375 = vmatpush1.bf16.msra.mxu0 0
    %376 = vmatprep.subr.bf16.mxu0 0
    %377 = vmatpush1.bf16.msra.mxu0 0
    %378 = vmatprep.subr.bf16.mxu0 0
    %379 = vmatpush1.bf16.msra.mxu0 0
    %380 = vmatprep.subr.bf16.mxu0 0
    %381 = vmatpush1.bf16.msra.mxu0 0
    %382 = vmatprep.subr.bf16.mxu0 0
    %383 = vmatpush1.bf16.msra.mxu0 0
    %384 = vmatprep.subr.bf16.mxu0 0
    %385 = vmatpush1.bf16.msra.mxu0 0
    %386 = vmatprep.subr.bf16.mxu0 0
    %387 = vmatpush1.bf16.msra.mxu0 0
    %388 = vmatprep.subr.bf16.mxu0 0
    %389 = vmatpush1.bf16.msra.mxu0 0
    %390 = vmatprep.mubr.bf16.mxu0 0
    %391 = vmatmul.mubr.bf16.gmra.mrb[0].mxu0 %v259
    %v392 = vpop.f32.mrb[0].mxu0
    %v393 = vadd.f32 0.0, %v392
    %v394 = vpop.f32.mrb[0].mxu0
    %v395 = vpop.f32.mrb[0].mxu0
    %v396 = vadd.f32 0.0, %v395
    %v397 = vpop.f32.mrb[0].mxu0
    %398 = vmatprep.mubr.bf16.mxu0 0
    %399 = vmatmul.mubr.bf16.gmra.mrb[0].mxu0 %v262
    %v400 = vpop.f32.mrb[0].mxu0
    %v401 = vadd.f32 0.0, %v400
    %v402 = vpop.f32.mrb[0].mxu0
    %v403 = vpop.f32.mrb[0].mxu0
    %v404 = vadd.f32 0.0, %v403
    %v405 = vpop.f32.mrb[0].mxu0
    %406 = vmatprep.mubr.bf16.mxu0 0
    %407 = vmatmul.mubr.bf16.gmra.mrb[0].mxu0 %v265
    %v408 = vpop.f32.mrb[0].mxu0
    %v409 = vadd.f32 0.0, %v408
    %v410 = vpop.f32.mrb[0].mxu0
    %v411 = vpop.f32.mrb[0].mxu0
    %v412 = vadd.f32 0.0, %v411
    %v413 = vpop.f32.mrb[0].mxu0
    %414 = vmatprep.mubr.bf16.mxu0 0
    %415 = vmatmul.mubr.bf16.gmra.mrb[0].mxu0 %v268
    %v416 = vpop.f32.mrb[0].mxu0
    %v417 = vadd.f32 0.0, %v416
    %v418 = vpop.f32.mrb[0].mxu0
    %v419 = vpop.f32.mrb[0].mxu0
    %v420 = vadd.f32 0.0, %v419
    %v421 = vpop.f32.mrb[0].mxu0
    %422 = vmatprep.mubr.bf16.mxu0 0
    %423 = vmatmul.mubr.bf16.gmra.mrb[0].mxu0 %v271
    %v424 = vpop.f32.mrb[0].mxu0
    %v425 = vadd.f32 0.0, %v424
    %v426 = vpop.f32.mrb[0].mxu0
    %v427 = vpop.f32.mrb[0].mxu0
    %v428 = vadd.f32 0.0, %v427
    %v429 = vpop.f32.mrb[0].mxu0
    %430 = vmatprep.mubr.bf16.mxu0 0
    %431 = vmatmul.mubr.bf16.gmra.mrb[0].mxu0 %v274
    %v432 = vpop.f32.mrb[0].mxu0
    %v433 = vadd.f32 0.0, %v432
    %v434 = vpop.f32.mrb[0].mxu0
    %v435 = vpop.f32.mrb[0].mxu0
    %v436 = vadd.f32 0.0, %v435
    %v437 = vpop.f32.mrb[0].mxu0
    %438 = vmatprep.mubr.bf16.mxu0 0
    %439 = vmatmul.mubr.bf16.gmra.mrb[0].mxu0 %v277
    %v440 = vpop.f32.mrb[0].mxu0
    %v441 = vadd.f32 0.0, %v440
    %v442 = vpop.f32.mrb[0].mxu0
    %v443 = vpop.f32.mrb[0].mxu0
    %v444 = vadd.f32 0.0, %v443
    %v445 = vpop.f32.mrb[0].mxu0
    %446 = vmatprep.mubr.bf16.mxu0 0
    %447 = vmatmul.mubr.bf16.gmra.mrb[0].mxu0 %v280
    %v448 = vpop.f32.mrb[0].mxu0
    %v449 = vadd.f32 0.0, %v448
    %v450 = vpop.f32.mrb[0].mxu0
    %v451 = vpop.f32.mrb[0].mxu0
    %v452 = vadd.f32 0.0, %v451
    %v453 = vpop.f32.mrb[0].mxu0
    %454 = vmatprep.mubr.bf16.mxu0 0
    %455 = vmatmul.mubr.bf16.gmra.mrb[0].mxu0 %v283
    %v456 = vpop.f32.mrb[0].mxu0
    %v457 = vadd.f32 0.0, %v456
    %v458 = vpop.f32.mrb[0].mxu0
    %v459 = vpop.f32.mrb[0].mxu0
    %v460 = vadd.f32 0.0, %v459
    %v461 = vpop.f32.mrb[0].mxu0
    %462 = vmatprep.mubr.bf16.mxu0 0
    %463 = vmatmul.mubr.bf16.gmra.mrb[0].mxu0 %v286
    %v464 = vpop.f32.mrb[0].mxu0
    %v465 = vadd.f32 0.0, %v464
    %v466 = vpop.f32.mrb[0].mxu0
    %v467 = vpop.f32.mrb[0].mxu0
    %v468 = vadd.f32 0.0, %v467
    %v469 = vpop.f32.mrb[0].mxu0
    %470 = vmatprep.mubr.bf16.mxu0 0
    %471 = vmatmul.mubr.bf16.gmra.mrb[0].mxu0 %v289
    %v472 = vpop.f32.mrb[0].mxu0
    %v473 = vadd.f32 0.0, %v472
    %v474 = vpop.f32.mrb[0].mxu0
    %v475 = vpop.f32.mrb[0].mxu0
    %v476 = vadd.f32 0.0, %v475
    %v477 = vpop.f32.mrb[0].mxu0
    %478 = vmatprep.mubr.bf16.mxu0 0
    %479 = vmatmul.mubr.bf16.gmra.mrb[0].mxu0 %v292
    %v480 = vpop.f32.mrb[0].mxu0
    %v481 = vadd.f32 0.0, %v480
    %v482 = vpop.f32.mrb[0].mxu0
    %v483 = vpop.f32.mrb[0].mxu0
    %v484 = vadd.f32 0.0, %v483
    %v485 = vpop.f32.mrb[0].mxu0
    %486 = vmatprep.mubr.bf16.mxu0 0
    %487 = vmatmul.mubr.bf16.gmra.mrb[0].mxu0 %v295
    %v488 = vpop.f32.mrb[0].mxu0
    %v489 = vadd.f32 0.0, %v488
    %v490 = vpop.f32.mrb[0].mxu0
    %v491 = vpop.f32.mrb[0].mxu0
    %v492 = vadd.f32 0.0, %v491
    %v493 = vpop.f32.mrb[0].mxu0
    %494 = vmatprep.mubr.bf16.mxu0 0
    %495 = vmatmul.mubr.bf16.gmra.mrb[0].mxu0 %v298
    %v496 = vpop.f32.mrb[0].mxu0
    %v497 = vadd.f32 0.0, %v496
    %v498 = vpop.f32.mrb[0].mxu0
    %v499 = vpop.f32.mrb[0].mxu0
    %v500 = vadd.f32 0.0, %v499
    %v501 = vpop.f32.mrb[0].mxu0
    %502 = vmatprep.mubr.bf16.mxu0 0
    %503 = vmatmul.mubr.bf16.gmra.mrb[0].mxu0 %v301
    %v504 = vpop.f32.mrb[0].mxu0
    %v505 = vadd.f32 0.0, %v504
    %v506 = vpop.f32.mrb[0].mxu0
    %v507 = vpop.f32.mrb[0].mxu0
    %v508 = vadd.f32 0.0, %v507
    %v509 = vpop.f32.mrb[0].mxu0
    %510 = vmatprep.mubr.bf16.mxu0 0
    %511 = vmatmul.mubr.bf16.gmra.mrb[0].mxu0 %v304
    %v512 = vpop.f32.mrb[0].mxu0
    %v513 = vadd.f32 0.0, %v512
    %v514 = vpop.f32.mrb[0].mxu0
    %v515 = vpop.f32.mrb[0].mxu0
    %v516 = vadd.f32 0.0, %v515
    %v517 = vpop.f32.mrb[0].mxu0
    %518 = vmatprep.mubr.bf16.mxu0 0
    %519 = vmatmul.mubr.bf16.gmra.mrb[0].mxu0 %v307
    %v520 = vpop.f32.mrb[0].mxu0
    %v521 = vadd.f32 0.0, %v520
    %v522 = vpop.f32.mrb[0].mxu0
    %v523 = vpop.f32.mrb[0].mxu0
    %v524 = vadd.f32 0.0, %v523
    %v525 = vpop.f32.mrb[0].mxu0
    %526 = vmatprep.mubr.bf16.mxu0 0
    %527 = vmatmul.mubr.bf16.gmra.mrb[0].mxu0 %v310
    %v528 = vpop.f32.mrb[0].mxu0
    %v529 = vadd.f32 0.0, %v528
    %v530 = vpop.f32.mrb[0].mxu0
    %v531 = vpop.f32.mrb[0].mxu0
    %v532 = vadd.f32 0.0, %v531
    %v533 = vpop.f32.mrb[0].mxu0
    %534 = vmatprep.mubr.bf16.mxu0 0
    %535 = vmatmul.mubr.bf16.gmra.mrb[0].mxu0 %v313
    %v536 = vpop.f32.mrb[0].mxu0
    %v537 = vadd.f32 0.0, %v536
    %v538 = vpop.f32.mrb[0].mxu0
    %v539 = vpop.f32.mrb[0].mxu0
    %v540 = vadd.f32 0.0, %v539
    %v541 = vpop.f32.mrb[0].mxu0
    %542 = vmatprep.mubr.bf16.mxu0 0
    %543 = vmatmul.mubr.bf16.gmra.mrb[0].mxu0 %v316
    %v544 = vpop.f32.mrb[0].mxu0
    %v545 = vadd.f32 0.0, %v544
    %v546 = vpop.f32.mrb[0].mxu0
    %v547 = vpop.f32.mrb[0].mxu0
    %v548 = vadd.f32 0.0, %v547
    %v549 = vpop.f32.mrb[0].mxu0
    %550 = vmatprep.mubr.bf16.mxu0 0
    %551 = vmatmul.mubr.bf16.gmra.mrb[0].mxu0 %v319
    %v552 = vpop.f32.mrb[0].mxu0
    %v553 = vadd.f32 0.0, %v552
    %v554 = vpop.f32.mrb[0].mxu0
    %v555 = vpop.f32.mrb[0].mxu0
    %v556 = vadd.f32 0.0, %v555
    %v557 = vpop.f32.mrb[0].mxu0
    %558 = vmatprep.mubr.bf16.mxu0 0
    %559 = vmatmul.mubr.bf16.gmra.mrb[0].mxu0 %v322
    %v560 = vpop.f32.mrb[0].mxu0
    %v561 = vadd.f32 0.0, %v560
    %v562 = vpop.f32.mrb[0].mxu0
    %v563 = vpop.f32.mrb[0].mxu0
    %v564 = vadd.f32 0.0, %v563
    %v565 = vpop.f32.mrb[0].mxu0
    %566 = vmatprep.mubr.bf16.mxu0 0
    %567 = vmatmul.mubr.bf16.gmra.mrb[0].mxu0 %v325
    %v568 = vpop.f32.mrb[0].mxu0
    %v569 = vadd.f32 0.0, %v568
    %v570 = vpop.f32.mrb[0].mxu0
    %v571 = vpop.f32.mrb[0].mxu0
    %v572 = vadd.f32 0.0, %v571
    %v573 = vpop.f32.mrb[0].mxu0
    %574 = vmatprep.mubr.bf16.mxu0 0
    %575 = vmatmul.mubr.bf16.gmra.mrb[0].mxu0 %v328
    %v576 = vpop.f32.mrb[0].mxu0
    %v577 = vadd.f32 0.0, %v576
    %v578 = vpop.f32.mrb[0].mxu0
    %v579 = vpop.f32.mrb[0].mxu0
    %v580 = vadd.f32 0.0, %v579
    %v581 = vpop.f32.mrb[0].mxu0
    %582 = vmatprep.mubr.bf16.mxu0 0
    %583 = vmatmul.mubr.bf16.gmra.mrb[0].mxu0 %v331
    %v584 = vpop.f32.mrb[0].mxu0
    %v585 = vadd.f32 0.0, %v584
    %v586 = vpop.f32.mrb[0].mxu0
    %v587 = vpop.f32.mrb[0].mxu0
    %v588 = vadd.f32 0.0, %v587
    %v589 = vpop.f32.mrb[0].mxu0
    %590 = vmatprep.mubr.bf16.mxu0 0
    %591 = vmatmul.mubr.bf16.gmra.mrb[0].mxu0 %v334
    %v592 = vpop.f32.mrb[0].mxu0
    %v593 = vadd.f32 0.0, %v592
    %v594 = vpop.f32.mrb[0].mxu0
    %v595 = vpop.f32.mrb[0].mxu0
    %v596 = vadd.f32 0.0, %v595
    %v597 = vpop.f32.mrb[0].mxu0
    %598 = vmatprep.mubr.bf16.mxu0 0
    %599 = vmatmul.mubr.bf16.gmra.mrb[0].mxu0 %v337
    %v600 = vpop.f32.mrb[0].mxu0
    %v601 = vadd.f32 0.0, %v600
    %v602 = vpop.f32.mrb[0].mxu0
    %v603 = vpop.f32.mrb[0].mxu0
    %v604 = vadd.f32 0.0, %v603
    %v605 = vpop.f32.mrb[0].mxu0
    %606 = vmatprep.mubr.bf16.mxu0 0
    %607 = vmatmul.mubr.bf16.gmra.mrb[0].mxu0 %v340
    %v608 = vpop.f32.mrb[0].mxu0
    %v609 = vadd.f32 0.0, %v608
    %v610 = vpop.f32.mrb[0].mxu0
    %v611 = vpop.f32.mrb[0].mxu0
    %v612 = vadd.f32 0.0, %v611
    %v613 = vpop.f32.mrb[0].mxu0
    %614 = vmatprep.mubr.bf16.mxu0 0
    %615 = vmatmul.mubr.bf16.gmra.mrb[0].mxu0 %v343
    %v616 = vpop.f32.mrb[0].mxu0
    %v617 = vadd.f32 0.0, %v616
    %v618 = vpop.f32.mrb[0].mxu0
    %v619 = vpop.f32.mrb[0].mxu0
    %v620 = vadd.f32 0.0, %v619
    %v621 = vpop.f32.mrb[0].mxu0
    %622 = vmatprep.mubr.bf16.mxu0 0
    %623 = vmatmul.mubr.bf16.gmra.mrb[0].mxu0 %v346
    %v624 = vpop.f32.mrb[0].mxu0
    %v625 = vadd.f32 0.0, %v624
    %v626 = vpop.f32.mrb[0].mxu0
    %v627 = vpop.f32.mrb[0].mxu0
    %v628 = vadd.f32 0.0, %v627
    %v629 = vpop.f32.mrb[0].mxu0
    %630 = vmatprep.mubr.bf16.mxu0 0
    %631 = vmatmul.mubr.bf16.gmra.mrb[0].mxu0 %v349
    %v632 = vpop.f32.mrb[0].mxu0
    %v633 = vadd.f32 0.0, %v632
    %v634 = vpop.f32.mrb[0].mxu0
    %v635 = vpop.f32.mrb[0].mxu0
    %v636 = vadd.f32 0.0, %v635
    %v637 = vpop.f32.mrb[0].mxu0
    %638 = vmatprep.mubr.bf16.mxu0 0
    %639 = vmatmul.mubr.bf16.gmra.mrb[0].mxu0 %v352
    %v640 = vpop.f32.mrb[0].mxu0
    %v641 = vadd.f32 0.0, %v640
    %v642 = vpop.f32.mrb[0].mxu0
    %v643 = vpop.f32.mrb[0].mxu0
    %v644 = vadd.f32 0.0, %v643
    %v645 = vpop.f32.mrb[0].mxu0
    %646 = vdwg.mxu0
    %v647 = vmax.f32 %v393, %v457
    %v648 = vmax.f32 %v396, %v460
    %v649 = vmax.f32 %v401, %v465
    %v650 = vmax.f32 %v404, %v468
    %v651 = vmax.f32 %v409, %v473
    %v652 = vmax.f32 %v412, %v476
    %v653 = vmax.f32 %v417, %v481
    %v654 = vmax.f32 %v420, %v484
    %v655 = vmax.f32 %v521, %v585
    %v656 = vmax.f32 %v524, %v588
    %v657 = vmax.f32 %v529, %v593
    %v658 = vmax.f32 %v532, %v596
    %v659 = vmax.f32 %v537, %v601
    %v660 = vmax.f32 %v540, %v604
    %v661 = vmax.f32 %v545, %v609
    %v662 = vmax.f32 %v548, %v612
    %v663 = vmax.f32 %v648, %v457
    %v664 = vmax.f32 %v649, %v460
    %v665 = vmax.f32 %v650, %v465
    %v666 = vmax.f32 %v651, %v468
    %v667 = vmax.f32 %v652, %v473
    %v668 = vmax.f32 %v653, %v476
    %v669 = vmax.f32 %v654, %v481
    %v670 = vmax.f32 %v656, %v585
    %v671 = vmax.f32 %v657, %v588
    %v672 = vmax.f32 %v658, %v593
    %v673 = vmax.f32 %v659, %v596
    %v674 = vmax.f32 %v660, %v601
    %v675 = vmax.f32 %v661, %v604
    %v676 = vmax.f32 %v662, %v609
    %v677 = vmax.f32 %v425, %v489
    %v678 = vmax.f32 %v428, %v492
    %v679 = vmax.f32 %v433, %v497
    %v680 = vmax.f32 %v436, %v500
    %v681 = vmax.f32 %v441, %v505
    %v682 = vmax.f32 %v444, %v508
    %v683 = vmax.f32 %v449, %v513
    %v684 = vmax.f32 %v452, %v516
    %v685 = vmax.f32 %v553, %v617
    %v686 = vmax.f32 %v556, %v620
    %v687 = vmax.f32 %v561, %v625
    %v688 = vmax.f32 %v564, %v628
    %v689 = vmax.f32 %v569, %v633
    %v690 = vmax.f32 %v572, %v636
    %v691 = vmax.f32 %v577, %v641
    %v692 = vmax.f32 %v580, %v644
    %v693 = vmax.f32 %v678, %v489
    %v694 = vmax.f32 %v679, %v492
    %v695 = vmax.f32 %v680, %v497
    %v696 = vmax.f32 %v681, %v500
    %v697 = vmax.f32 %v682, %v505
    %v698 = vmax.f32 %v683, %v508
    %v699 = vmax.f32 %v684, %v513
    %v700 = vmax.f32 %v686, %v617
    %v701 = vmax.f32 %v687, %v620
    %v702 = vmax.f32 %v688, %v625
    %v703 = vmax.f32 %v689, %v628
    %v704 = vmax.f32 %v690, %v633
    %v705 = vmax.f32 %v691, %v636
    %v706 = vmax.f32 %v692, %v641
    %v707 = vlaneseq
    %v708 = vshrl.u32 %v707, 7
    %v709 = vadd.s32 %v708, 8
    %v710 = vadd.s32 %v708, 16
    %v711 = vadd.s32 %v708, 24
    %v712 = vadd.s32 %v708, 32
    %v713 = vadd.s32 %v708, 40
    %v714 = vadd.s32 %v708, 48
    %v715 = vadd.s32 %v708, 56
    %vm716 = vcmp.lt.s32.totalorder %v708, 0
    %v717 = vsub.s32 0, %v708
    %v718 = vsel %vm716, %v717, %v708
    %v719 = vshrl.u32 %v718, 3
    %v720 = vand.u32 %v718, 7
    %v721 = vsub.s32 0, %v720
    %v722 = vsel %vm716, %v721, %v720
    %vm723 = vcmp.lt.s32.totalorder %v709, 0
    %v724 = vsub.s32 0, %v709
    %v725 = vsel %vm723, %v724, %v709
    %v726 = vshrl.u32 %v725, 3
    %v727 = vand.u32 %v725, 7
    %v728 = vsub.s32 0, %v727
    %v729 = vsel %vm723, %v728, %v727
    %vm730 = vcmp.lt.s32.totalorder %v710, 0
    %v731 = vsub.s32 0, %v710
    %v732 = vsel %vm730, %v731, %v710
    %v733 = vshrl.u32 %v732, 3
    %v734 = vand.u32 %v732, 7
    %v735 = vsub.s32 0, %v734
    %v736 = vsel %vm730, %v735, %v734
    %vm737 = vcmp.lt.s32.totalorder %v711, 0
    %v738 = vsub.s32 0, %v711
    %v739 = vsel %vm737, %v738, %v711
    %v740 = vshrl.u32 %v739, 3
    %v741 = vand.u32 %v739, 7
    %v742 = vsub.s32 0, %v741
    %v743 = vsel %vm737, %v742, %v741
    %vm744 = vcmp.lt.s32.totalorder %v712, 0
    %v745 = vsub.s32 0, %v712
    %v746 = vsel %vm744, %v745, %v712
    %v747 = vshrl.u32 %v746, 3
    %v748 = vand.u32 %v746, 7
    %v749 = vsub.s32 0, %v748
    %v750 = vsel %vm744, %v749, %v748
    %vm751 = vcmp.lt.s32.totalorder %v713, 0
    %v752 = vsub.s32 0, %v713
    %v753 = vsel %vm751, %v752, %v713
    %v754 = vshrl.u32 %v753, 3
    %v755 = vand.u32 %v753, 7
    %v756 = vsub.s32 0, %v755
    %v757 = vsel %vm751, %v756, %v755
    %vm758 = vcmp.lt.s32.totalorder %v714, 0
    %v759 = vsub.s32 0, %v714
    %v760 = vsel %vm758, %v759, %v714
    %v761 = vshrl.u32 %v760, 3
    %v762 = vand.u32 %v760, 7
    %v763 = vsub.s32 0, %v762
    %v764 = vsel %vm758, %v763, %v762
    %vm765 = vcmp.lt.s32.totalorder %v715, 0
    %v766 = vsub.s32 0, %v715
    %v767 = vsel %vm765, %v766, %v715
    %v768 = vshrl.u32 %v767, 3
    %v769 = vand.u32 %v767, 7
    %v770 = vsub.s32 0, %v769
    %v771 = vsel %vm765, %v770, %v769
    %vm772 = vcmp.ne.s32.totalorder %v722, 0
    %vm773 = vcmp.ne.s32.totalorder %v729, 0
    %vm774 = vcmp.ne.s32.totalorder %v736, 0
    %vm775 = vcmp.ne.s32.totalorder %v743, 0
    %vm776 = vcmp.ne.s32.totalorder %v750, 0
    %vm777 = vcmp.ne.s32.totalorder %v757, 0
    %vm778 = vcmp.ne.s32.totalorder %v764, 0
    %vm779 = vcmp.ne.s32.totalorder %v771, 0
    %vm780 = vcmp.lt.s32.totalorder %v722, 0
    %vm781 = vcmp.lt.s32.totalorder %v729, 0
    %vm782 = vcmp.lt.s32.totalorder %v736, 0
    %vm783 = vcmp.lt.s32.totalorder %v743, 0
    %vm784 = vcmp.lt.s32.totalorder %v750, 0
    %vm785 = vcmp.lt.s32.totalorder %v757, 0
    %vm786 = vcmp.lt.s32.totalorder %v764, 0
    %vm787 = vcmp.lt.s32.totalorder %v771, 0
    %vm788 = vmand %vm780, %vm772
    %vm789 = vmand %vm781, %vm773
    %vm790 = vmand %vm782, %vm774
    %vm791 = vmand %vm783, %vm775
    %vm792 = vmand %vm784, %vm776
    %vm793 = vmand %vm785, %vm777
    %vm794 = vmand %vm786, %vm778
    %vm795 = vmand %vm787, %vm779
    %v796 = vadd.s32 %v722, 8
    %v797 = vadd.s32 %v729, 8
    %v798 = vadd.s32 %v736, 8
    %v799 = vadd.s32 %v743, 8
    %v800 = vadd.s32 %v750, 8
    %v801 = vadd.s32 %v757, 8
    %v802 = vadd.s32 %v764, 8
    %v803 = vadd.s32 %v771, 8
    %v804 = vsel %vm788, %v796, %v722
    %v805 = vsel %vm789, %v797, %v729
    %v806 = vsel %vm790, %v798, %v736
    %v807 = vsel %vm791, %v799, %v743
    %v808 = vsel %vm792, %v800, %v750
    %v809 = vsel %vm793, %v801, %v757
    %v810 = vsel %vm794, %v802, %v764
    %v811 = vsel %vm795, %v803, %v771
    %vm812 = vcmp.eq.s32.totalorder %v804, 0
    %vm813 = vcmp.eq.s32.totalorder %v805, 0
    %vm814 = vcmp.eq.s32.totalorder %v806, 0
    %vm815 = vcmp.eq.s32.totalorder %v807, 0
    %vm816 = vcmp.eq.s32.totalorder %v808, 0
    %vm817 = vcmp.eq.s32.totalorder %v809, 0
    %vm818 = vcmp.eq.s32.totalorder %v810, 0
    %vm819 = vcmp.eq.s32.totalorder %v811, 0
    %vm836 = vcmask 1040384
    %v837 = vrot.slane %v677, 7
    %v838 = vrot.slane %v693, 7
    %v839 = vsel %vm836, %v837, %v838
    %v840 = vrot.slane %v694, 7
    %v841 = vsel %vm836, %v838, %v840
    %v842 = vrot.slane %v695, 7
    %v843 = vsel %vm836, %v840, %v842
    %v844 = vrot.slane %v696, 7
    %v845 = vsel %vm836, %v842, %v844
    %v846 = vrot.slane %v697, 7
    %v847 = vsel %vm836, %v844, %v846
    %v848 = vrot.slane %v698, 7
    %v849 = vsel %vm836, %v846, %v848
    %v850 = vrot.slane %v699, 7
    %v851 = vsel %vm836, %v848, %v850
    %v852 = vrot.slane %v685, 7
    %v853 = vrot.slane %v700, 7
    %v854 = vsel %vm836, %v852, %v853
    %v855 = vrot.slane %v701, 7
    %v856 = vsel %vm836, %v853, %v855
    %v857 = vrot.slane %v702, 7
    %v858 = vsel %vm836, %v855, %v857
    %v859 = vrot.slane %v703, 7
    %v860 = vsel %vm836, %v857, %v859
    %v861 = vrot.slane %v704, 7
    %v862 = vsel %vm836, %v859, %v861
    %v863 = vrot.slane %v705, 7
    %v864 = vsel %vm836, %v861, %v863
    %v865 = vrot.slane %v706, 7
    %v866 = vsel %vm836, %v863, %v865
    %v883 = vsel %vm836, -inf, %v837
    %v884 = vsel %vm836, -inf, %v852
    %v885 = vsel %vm812, 1, 0
    %v886 = vsel %vm813, 1, 0
    %v887 = vsel %vm814, 1, 0
    %v888 = vsel %vm815, 1, 0
    %v889 = vsel %vm816, 1, 0
    %v890 = vsel %vm817, 1, 0
    %v891 = vsel %vm818, 1, 0
    %v892 = vsel %vm819, 1, 0
    %vm893 = vcmp.eq.s32.totalorder %v885, 1
    %vm894 = vcmp.eq.s32.totalorder %v886, 1
    %vm895 = vcmp.eq.s32.totalorder %v887, 1
    %vm896 = vcmp.eq.s32.totalorder %v888, 1
    %vm897 = vcmp.eq.s32.totalorder %v889, 1
    %vm898 = vcmp.eq.s32.totalorder %v890, 1
    %vm899 = vcmp.eq.s32.totalorder %v891, 1
    %vm900 = vcmp.eq.s32.totalorder %v892, 1
    %v901 = vsel %vm893, -inf, %v883
    %v902 = vsel %vm894, -inf, %v839
    %v903 = vsel %vm895, -inf, %v841
    %v904 = vsel %vm896, -inf, %v843
    %v905 = vsel %vm897, -inf, %v845
    %v906 = vsel %vm898, -inf, %v847
    %v907 = vsel %vm899, -inf, %v849
    %v908 = vsel %vm900, -inf, %v851
    %v909 = vsel %vm893, -inf, %v884
    %v910 = vsel %vm894, -inf, %v854
    %v911 = vsel %vm895, -inf, %v856
    %v912 = vsel %vm896, -inf, %v858
    %v913 = vsel %vm897, -inf, %v860
    %v914 = vsel %vm898, -inf, %v862
    %v915 = vsel %vm899, -inf, %v864
    %v916 = vsel %vm900, -inf, %v866
    %v917 = vmax.f32 %v647, %v677
    %v918 = vmax.f32 %v663, %v693
    %v919 = vmax.f32 %v664, %v694
    %v920 = vmax.f32 %v665, %v695
    %v921 = vmax.f32 %v666, %v696
    %v922 = vmax.f32 %v667, %v697
    %v923 = vmax.f32 %v668, %v698
    %v924 = vmax.f32 %v669, %v699
    %v925 = vmax.f32 %v655, %v685
    %v926 = vmax.f32 %v670, %v700
    %v927 = vmax.f32 %v671, %v701
    %v928 = vmax.f32 %v672, %v702
    %v929 = vmax.f32 %v673, %v703
    %v930 = vmax.f32 %v674, %v704
    %v931 = vmax.f32 %v675, %v705
    %v932 = vmax.f32 %v676, %v706
    %v933 = vmax.f32 %v917, %v901
    %v934 = vmax.f32 %v918, %v902
    %v935 = vmax.f32 %v919, %v903
    %v936 = vmax.f32 %v920, %v904
    %v937 = vmax.f32 %v921, %v905
    %v938 = vmax.f32 %v922, %v906
    %v939 = vmax.f32 %v923, %v907
    %v940 = vmax.f32 %v924, %v908
    %v941 = vmax.f32 %v925, %v909
    %v942 = vmax.f32 %v926, %v910
    %v943 = vmax.f32 %v927, %v911
    %v944 = vmax.f32 %v928, %v912
    %v945 = vmax.f32 %v929, %v913
    %v946 = vmax.f32 %v930, %v914
    %v947 = vmax.f32 %v931, %v915
    %v948 = vmax.f32 %v932, %v916
    %vm949 = vcmask 523264
    %950 = vst.msk [vmem:[#allocation2] sm:$0xff] %vm949, %v933
    %951 = vst.msk [vmem:[#allocation2 + $0x8] sm:$0xff] %vm949, %v934
    %952 = vst.msk [vmem:[#allocation2 + $0x10] sm:$0xff] %vm949, %v935
    %953 = vst.msk [vmem:[#allocation2 + $0x18] sm:$0xff] %vm949, %v936
    %954 = vst.msk [vmem:[#allocation2 + $0x20] sm:$0xff] %vm949, %v937
    %955 = vst.msk [vmem:[#allocation2 + $0x28] sm:$0xff] %vm949, %v938
    %956 = vst.msk [vmem:[#allocation2 + $0x30] sm:$0xff] %vm949, %v939
    %957 = vst.msk [vmem:[#allocation2 + $0x38] sm:$0xff] %vm949, %v940
    %958 = vst.msk [vmem:[#allocation2 + $0x40] sm:$0xff] %vm949, %v941
    %959 = vst.msk [vmem:[#allocation2 + $0x48] sm:$0xff] %vm949, %v942
    %960 = vst.msk [vmem:[#allocation2 + $0x50] sm:$0xff] %vm949, %v943
    %961 = vst.msk [vmem:[#allocation2 + $0x58] sm:$0xff] %vm949, %v944
    %962 = vst.msk [vmem:[#allocation2 + $0x60] sm:$0xff] %vm949, %v945
    %963 = vst.msk [vmem:[#allocation2 + $0x68] sm:$0xff] %vm949, %v946
    %964 = vst.msk [vmem:[#allocation2 + $0x70] sm:$0xff] %vm949, %v947
    %965 = vst.msk [vmem:[#allocation2 + $0x78] sm:$0xff] %vm949, %v948
    // Predicated region
    $region10: #{tpu_custom_call.1} parent=1 // pred_check
      _
    $region11: #{tpu_custom_call.1} parent=1 // pred_check_branch
      %967 = sbr.rel (0) target = $region13
    $region12: #{tpu_custom_call.1} parent=1 // pred_region
      %s969 = ssub.s32 2048, 2048
      %970 = vsyncadd [#allocation3], %s969
      %s971 = sshll.u32 [#allocation2], 4
      %s972 = int_to_ptr.vmem [resolvable:$true] %s971
      %977 = dma.vmem_to_hbm [thread:$0]  %s972, 2048, %s2, [#allocation3], 128, 128, 8
    $region13: #{tpu_custom_call.1} parent=1 // pred_fallthru
      _
    // Predicated region
    $region14: #{tpu_custom_call.1} parent=1 // pred_check
      _
    $region15: #{tpu_custom_call.1} parent=1 // pred_check_branch
      %979 = sbr.rel (0) target = $region17
    $region16: #{tpu_custom_call.1} parent=1 // pred_region
      %980 = dma.done [#allocation3], 2048
    $region17: #{tpu_custom_call.1} parent=1 // pred_fallthru
      _
    %981 = vsyncpa [#allocation3], 1

</llo_original>
